<compile_context>
chip_gen: v7x
topology: tpu7x:2x2x1
jax: 0.10.0
libtpu: 0.0.40
codegen_flags: <defaults>
</compile_context>

<pallas_src>
import functools

import jax
import jax.numpy as jnp
import numpy as np
from jax import lax
from jax.experimental import pallas as pl
from jax.experimental.pallas import tpu as pltpu


def _target_kernel(conf_ref, limit_ref, scores_ref, *rest, n, end2end, use_box):
    """Single-block kernel: prefix-break masked sum of scores or box coords."""
    if use_box:
        boxes_ref, out_ref = rest
    else:
        (out_ref,) = rest

    scores_full = scores_ref[...].astype(jnp.float32)          # (N, C)
    if end2end:
        scores = scores_full[:, 0:1]                            # (N, 1) col 0
    else:
        scores = jnp.max(scores_full, axis=-1, keepdims=True)   # (N, 1) row max

    conf = conf_ref[0]
    limit = limit_ref[0]

    # PyTorch break semantics: include rows strictly before the first failing
    # row, additionally capped at int(N * ratio).
    row = lax.broadcasted_iota(jnp.int32, (n, 1), 0)             # (N, 1)
    fail = scores < conf                                         # (N, 1) bool
    first_fail = jnp.min(jnp.where(fail, row, jnp.int32(n)))     # scalar
    cutoff = jnp.minimum(first_fail, limit)
    include = row < cutoff                                       # (N, 1) bool

    if use_box:
        boxes = boxes_ref[...].astype(jnp.float32)               # (N, 4)
        # include (N, 1) broadcasts across the 4 coordinate columns.
        out_ref[0, 0] = jnp.sum(jnp.where(include, boxes, 0.0))
    else:
        out_ref[0, 0] = jnp.sum(jnp.where(include, scores, 0.0))


def yolov8_target_pallas(post_result, pre_post_boxes, *,
                         output_type, conf, ratio, end2end):
    n, c = post_result.shape
    limit = int(n * ratio)

    # Mirror the if/elif structure of the PyTorch module exactly:
    # 'all' takes the class branch; the box branch is only reached for 'box'.
    use_class = output_type in ("class", "all")
    use_box = (output_type == "box")
    if not (use_class or use_box):
        return jnp.float32(0.0)

    conf_arr = jnp.asarray([conf], dtype=jnp.float32)
    limit_arr = jnp.asarray([limit], dtype=jnp.int32)

    smem_spec = pl.BlockSpec(memory_space=pltpu.MemorySpace.SMEM)
    vmem_spec = pl.BlockSpec(memory_space=pltpu.MemorySpace.VMEM)
    out_spec = pl.BlockSpec(memory_space=pltpu.MemorySpace.SMEM)
    out_shape = jax.ShapeDtypeStruct((1, 1), jnp.float32)

    operands = [conf_arr, limit_arr, post_result]
    in_specs = [smem_spec, smem_spec, vmem_spec]
    bytes_accessed = (post_result.size * post_result.dtype.itemsize
                      + 2 * 4 + 4)
    if use_box:
        operands.append(pre_post_boxes)
        in_specs.append(vmem_spec)
        bytes_accessed += pre_post_boxes.size * pre_post_boxes.dtype.itemsize

    cost = pl.CostEstimate(flops=int(n * c + 8 * n),
                           transcendentals=0,
                           bytes_accessed=int(bytes_accessed))

    kernel = functools.partial(_target_kernel, n=n, end2end=end2end,
                               use_box=use_box)
    out = pl.pallas_call(
        kernel,
        out_shape=out_shape,
        in_specs=in_specs,
        out_specs=out_spec,
        cost_estimate=cost,
    )(*operands)
    return out[0, 0]


def _reference(post_result, pre_post_boxes, *, output_type, conf, ratio, end2end):
    """Direct numpy transcription of the PyTorch forward loop."""
    post_result = np.asarray(post_result, dtype=np.float64)
    pre_post_boxes = np.asarray(pre_post_boxes, dtype=np.float64)
    result = []
    for i in range(int(post_result.shape[0] * ratio)):
        if (end2end and float(post_result[i, 0]) < conf) or \
           (not end2end and float(post_result[i].max()) < conf):
            break
        if output_type == "class" or output_type == "all":
            if end2end:
                result.append(post_result[i, 0])
            else:
                result.append(post_result[i].max())
        elif output_type == "box" or output_type == "all":
            for j in range(4):
                result.append(pre_post_boxes[i, j])
    return float(sum(result)) if result else 0.0


if __name__ == "__main__":
    # Small synthetic inputs consistent with the module's forward:
    #   post_result:    (N, num_classes) class scores per detection
    #   pre_post_boxes: (N, 4)           box coordinates per detection
    N, C = 16, 8
    key = jax.random.PRNGKey(0)
    k1, k2 = jax.random.split(key)

    post_result = jax.random.uniform(k1, (N, C), dtype=jnp.float32)
    pre_post_boxes = jax.random.uniform(
        k2, (N, 4), dtype=jnp.float32, minval=0.0, maxval=640.0)

    # Sort by descending row-max to mimic NMS-sorted YOLO output, so the
    # `break` prefix semantics are exercised meaningfully.
    order = jnp.argsort(-jnp.max(post_result, axis=1))
    post_sorted = post_result[order]
    boxes_sorted = pre_post_boxes[order]
    # For the end2end tests, sort by column 0 instead (that is the score used).
    order_e2e = jnp.argsort(-post_result[:, 0])
    post_e2e = post_result[order_e2e]
    boxes_e2e = pre_post_boxes[order_e2e]

    configs = [
        (post_sorted, boxes_sorted,
         dict(output_type="class", conf=0.5, ratio=0.5, end2end=False), 1e-4),
        (post_sorted, boxes_sorted,
         dict(output_type="box", conf=0.5, ratio=0.5, end2end=False), 1e-2),
        (post_sorted, boxes_sorted,
         dict(output_type="all", conf=0.5, ratio=0.75, end2end=False), 1e-4),
        (post_e2e, boxes_e2e,
         dict(output_type="class", conf=0.5, ratio=0.5, end2end=True), 1e-4),
        (post_e2e, boxes_e2e,
         dict(output_type="box", conf=0.5, ratio=0.5, end2end=True), 1e-2),
    ]

    for post, boxes, cfg, atol in configs:
        out = jax.block_until_ready(yolov8_target_pallas(post, boxes, **cfg))
        ref = _reference(np.asarray(post), np.asarray(boxes), **cfg)
        assert np.allclose(float(out), ref, rtol=1e-4, atol=atol), (
            cfg, float(out), ref)

    print("KERNEL_OK")
</pallas_src>

<mosaic_0001>
module attributes {stable_mosaic.version = 11 : i64} {
  func.func @_target_kernel(%arg0: memref<1xf32, #tpu.memory_space<smem>>, %arg1: memref<1xi32, #tpu.memory_space<smem>>, %arg2: memref<16x8xf32, #tpu.memory_space<vmem>>, %arg3: memref<1x1xf32, #tpu.memory_space<smem>>) attributes {dimension_semantics = [], scalar_prefetch = 0 : i64, scratch_operands = 0 : i64, tpu.core_type = #tpu.core_type<tc>} {
    %c0 = arith.constant 0 : index
    %c0_0 = arith.constant 0 : index
    %0 = vector.load %arg2[%c0, %c0_0] : memref<16x8xf32, #tpu.memory_space<vmem>>, vector<16x8xf32>
    %cst = arith.constant dense<0xFF800000> : vector<16xf32>
    %1 = vector.multi_reduction <maximumf>, %0, %cst [1] : vector<16x8xf32> to vector<16xf32>
    %2 = vector.shape_cast %1 : vector<16xf32> to vector<16x1xf32>
    %c0_1 = arith.constant 0 : index
    %3 = memref.load %arg0[%c0_1] : memref<1xf32, #tpu.memory_space<smem>>
    %c0_2 = arith.constant 0 : index
    %4 = memref.load %arg1[%c0_2] : memref<1xi32, #tpu.memory_space<smem>>
    %5 = tpu.iota {dimensions = array<i32: 0>} : vector<16x1xi32>
    %6 = vector.broadcast %3 : f32 to vector<16x1xf32>
    %7 = arith.cmpf olt, %2, %6 : vector<16x1xf32>
    %c16_i32 = arith.constant 16 : i32
    %8 = vector.broadcast %c16_i32 : i32 to vector<16x1xi32>
    %9 = arith.select %7, %5, %8 : vector<16x1xi1>, vector<16x1xi32>
    %10 = vector.shape_cast %9 : vector<16x1xi32> to vector<1x16x1xi32>
    %cst_3 = arith.constant dense<2147483647> : vector<1xi32>
    %11 = vector.multi_reduction <minsi>, %10, %cst_3 [1, 2] : vector<1x16x1xi32> to vector<1xi32>
    %12 = vector.shape_cast %11 : vector<1xi32> to vector<1x1x1xi32>
    %13 = vector.extract %12[0, 0, 0] : i32 from vector<1x1x1xi32>
    %14 = arith.minsi %13, %4 : i32
    %15 = vector.broadcast %14 : i32 to vector<16x1xi32>
    %16 = arith.cmpi slt, %5, %15 : vector<16x1xi32>
    %cst_4 = arith.constant 0.000000e+00 : f32
    %17 = vector.broadcast %cst_4 : f32 to vector<16x1xf32>
    %18 = arith.select %16, %2, %17 : vector<16x1xi1>, vector<16x1xf32>
    %19 = vector.shape_cast %18 : vector<16x1xf32> to vector<1x16x1xf32>
    %cst_5 = arith.constant dense<0.000000e+00> : vector<1xf32>
    %20 = vector.multi_reduction <add>, %19, %cst_5 [1, 2] : vector<1x16x1xf32> to vector<1xf32>
    %21 = vector.shape_cast %20 : vector<1xf32> to vector<1x1x1xf32>
    %22 = vector.extract %21[0, 0, 0] : f32 from vector<1x1x1xf32>
    %c0_6 = arith.constant 0 : index
    %c0_7 = arith.constant 0 : index
    %23 = memref.load %arg3[%c0_6, %c0_7] : memref<1x1xf32, #tpu.memory_space<smem>>
    memref.store %22, %arg3[%c0_6, %c0_7] : memref<1x1xf32, #tpu.memory_space<smem>>
    return
  }
}

</mosaic_0001>

<llo_original>
// kernel: tpu_custom_call.1
$region0: #{tpu_custom_call.1}
  #allocation0 [shape = 'u32[]', space=smem, size = 0x4, offset = 0x4, fixed_abs, tag = 'smem constant byte address 0x4 - core index']
  #allocation1 [shape = 'u32[144,128]{1,0:T(1,128)}', space=vmem, size = 0x12000, scoped, tag = 'internal scratch']
  #allocation2 [shape = 'f32[1]{0:T(128)S(6)}', space=smem, size = 0x200, scoped, tag = 'scoped memory for tpu_custom_call.1']
  #allocation3 [shape = 's32[1]{0:T(128)S(6)}', space=smem, size = 0x200, scoped, tag = 'scoped memory for tpu_custom_call.1']
  %s0 = inlined_call_operand.<no memory space> [shape: f32[1], index: 0, kind: input, shape index: {}]
  %s1 = inlined_call_operand.<no memory space> [shape: s32[1], index: 1, kind: input, shape index: {}]
  %s2 = inlined_call_operand.vmem [shape: f32[16,8], index: 2, kind: input, shape index: {}]
  %s3 = inlined_call_operand.hbm [shape: f32[1,1], index: 3, kind: output, shape index: {}]
  %s4 = sld [smem:[#allocation0]]
  $region22: #{tpu_custom_call.1} parent=0
    _
  %s6 = ssub.s32 1, %s4
  %s7 = scalar_select 0, %s6, %s4
  %8 = sst [smem:[#allocation2]] %s0
  %9 = sst [smem:[#allocation3]] %s1
  $region1: #{tpu_custom_call.1} parent=0
    #allocation4 [shape = 'u8[512]{0}', space=smem, size = 0x200, scoped, tag = 'output window, operand 0, single buffered']
    #allocation5 [shape = 's32[1]{0}', space=sflag, size = 0x4, scoped, tag = 'scoped memory for tpu_custom_call.1']
    %10 = vsyncpa [#allocation5], 0
    // Predicated region
    $region2: #{tpu_custom_call.1} parent=1 // pred_check
      _
    $region3: #{tpu_custom_call.1} parent=1 // pred_check_branch
      %12 = sbr.rel (0) target = $region5
    $region4: #{tpu_custom_call.1} parent=1 // pred_region
      _
    $region5: #{tpu_custom_call.1} parent=1 // pred_fallthru
      _
    // Predicated region
    $region6: #{tpu_custom_call.1} parent=1 // pred_check
      _
    $region7: #{tpu_custom_call.1} parent=1 // pred_check_branch
      %14 = sbr.rel (0) target = $region9
    $region8: #{tpu_custom_call.1} parent=1 // pred_region
      _
    $region9: #{tpu_custom_call.1} parent=1 // pred_fallthru
      _
    // Predicated region
    $region10: #{tpu_custom_call.1} parent=1 // pred_check
      _
    $region11: #{tpu_custom_call.1} parent=1 // pred_check_branch
      %16 = sbr.rel (0) target = $region13
    $region12: #{tpu_custom_call.1} parent=1 // pred_region
      _
    $region13: #{tpu_custom_call.1} parent=1 // pred_fallthru
      _
    %v17 = vld [vmem:[%s2] sm:$0xff]
    %v18 = vld [vmem:[%s2 + $0x8] sm:$0xff]
    %vm19 = vcmask 64512
    %v20 = vsel %vm19, %v17, -inf
    %21 = vmax.xlane.f32.xlu0 %v20
    %v22 = vpop.xlane.xlu0 %21
    %v23 = vsel %vm19, %v18, -inf
    %24 = vmax.xlane.f32.xlu0 %v23
    %v25 = vpop.xlane.xlu0 %24
    %s26 = sld [smem:[#allocation2]]
    %s27 = sld [smem:[#allocation3]]
    %v28 = vlaneseq
    %v29 = vshrl.u32 %v28, 7
    %v30 = vadd.s32 %v29, 8
    %v31 = vstv %s26
    %vm32 = vcmp.lt.f32.partialorder %v22, %v31
    %vm33 = vcmp.lt.f32.partialorder %v25, %v31
    %v34 = vsel %vm32, %v29, 16
    %v35 = vsel %vm33, %v30, 16
    %vm36 = vcmp.lt.s32.totalorder %v34, %v35
    %v37 = vsel %vm36, %v34, %v35
    %v38 = vrot.slane %v37, 4
    %vm39 = vcmp.lt.s32.totalorder %v37, %v38
    %v40 = vsel %vm39, %v37, %v38
    %v41 = vrot.slane %v40, 2
    %vm42 = vcmp.lt.s32.totalorder %v40, %v41
    %v43 = vsel %vm42, %v40, %v41
    %v44 = vrot.slane %v43, 1
    %vm45 = vcmp.lt.s32.totalorder %v43, %v44
    %v46 = vsel %vm45, %v43, %v44
    %s47 = vtos %v46
    %p48 = scmp.lt.s32.totalorder %s47, %s27
    %s49 = scalar_select %p48, %s47, %s27
    %v50 = vstv %s49
    %vm51 = vcmp.lt.s32.totalorder %v29, %v50
    %vm52 = vcmp.lt.s32.totalorder %v30, %v50
    %v53 = vsel %vm51, %v22, 0.0
    %v54 = vsel %vm52, %v25, 0.0
    %vm55 = vcmask 7168
    %v56 = vsel %vm55, %v53, 0.0
    %v57 = vsel %vm55, %v54, 0.0
    %v58 = vadd.f32 %v56, %v57
    %59 = vadd.xlane.f32.xlu0 %v58
    %v60 = vpop.xlane.xlu0 %59
    %v61 = vrot.slane %v60, 4
    %v62 = vadd.f32 %v60, %v61
    %v63 = vrot.slane %v62, 2
    %v64 = vadd.f32 %v62, %v63
    %v65 = vrot.slane %v64, 1
    %v66 = vadd.f32 %v64, %v65
    %s67 = vtos %v66
    %s68 = scalar_lea.smem [#allocation4], 0
    %69 = sst [smem:[%s68]] %s67
    // Predicated region
    $region14: #{tpu_custom_call.1} parent=1 // pred_check
      _
    $region15: #{tpu_custom_call.1} parent=1 // pred_check_branch
      %71 = sbr.rel (0) target = $region17
    $region16: #{tpu_custom_call.1} parent=1 // pred_region
      %s73 = ssub.s32 16, 16
      %74 = vsyncadd [#allocation5], %s73
      %77 = dma.smem_to_hbm [#allocation4], 16, %s3, [#allocation5]
    $region17: #{tpu_custom_call.1} parent=1 // pred_fallthru
      _
    // Predicated region
    $region18: #{tpu_custom_call.1} parent=1 // pred_check
      _
    $region19: #{tpu_custom_call.1} parent=1 // pred_check_branch
      %79 = sbr.rel (0) target = $region21
    $region20: #{tpu_custom_call.1} parent=1 // pred_region
      %80 = dma.done [#allocation5], 16
    $region21: #{tpu_custom_call.1} parent=1 // pred_fallthru
      _
    %81 = sfence
    %82 = vsyncpa [#allocation5], 1

</llo_original>
